<compile_context>
chip_gen: v5e
topology: v5e:2x2
jax: 0.10.0
libtpu: 0.0.40
codegen_flags: <defaults>
</compile_context>

<pallas_src>
import jax
import jax.numpy as jnp
import numpy as np
from jax.experimental import pallas as pl
from jax.experimental.pallas import tpu as pltpu

hidden_size = 10
input_size = 1
num_classes = 1
num_layers = 1
seq_length = 4

GL = 32            # lanes per gate: all 4 gates packed into a single 128-lane block
NG = 4 * GL        # = 128, one vreg lane-width of gate pre-activations
KH = 16            # recurrent MXU contraction dim (>= H; rows >= H of w_hh are zero)

_GATE_PERM = np.array([0, 1, 3, 2])  # PyTorch [i, f, g, o] -> kernel [i, f, o, g]


def lstm_kernel(x_ref, wih_ref, whh_ref, b_ref, wfc_ref, bfc_ref, out_ref):
    # x_ref:   (T, B, I)   time-major input
    # wih_ref: (I, NG)     input->gates weights, packed [i|f|o|g] at 32 lanes/gate
    #                      (g columns pre-scaled by 2; lanes >= H within a gate are 0)
    # whh_ref: (KH, NG)    hidden->gates weights, rows >= H are 0, packed as above
    # b_ref:   (1, NG)     combined bias (b_ih + b_hh), packed/scaled as above
    # wfc_ref: (C, GL)     fc weights (lanes >= H are 0)
    # bfc_ref: (1, C)      fc bias
    # out_ref: (B, C)
    T, B, I = x_ref.shape
    C = out_ref.shape[1]

    x = x_ref[...]
    w_ih = wih_ref[...]
    w_hh = whh_ref[...]
    b = b_ref[...]

    # Hoisted input projection: all T gate pre-activations computed up front,
    # off the serial recurrence.  With I == 1 this is an outer product -> VPU
    # broadcast multiply (no MXU round trip).
    if I == 1:
        xg_all = x * w_ih + b                                    # (T,B,1)*(1,NG) -> (T,B,NG)
    else:
        xg_all = (jnp.dot(x.reshape(T * B, I), w_ih,
                          preferred_element_type=jnp.float32) + b).reshape(T, B, NG)

    h = jnp.zeros((B, KH), jnp.float32)   # h_0 = 0 (pad lanes stay exactly 0)
    c = jnp.zeros((B, GL), jnp.float32)   # c_0 = 0
    h_full = jnp.zeros((B, GL), jnp.float32)

    # T is small and static -> unrolled recurrence.  Per step: one tiny
    # (B,KH)@(KH,NG) MXU matmul (K=16, N=128), one EUP sigmoid pass over a single
    # 128-lane vreg, one tanh over 32 lanes, a few sub-vreg VPU muls.
    for t in range(T):
        gates = xg_all[t] + jnp.dot(h, w_hh, preferred_element_type=jnp.float32)  # (B, NG)
        sig = jax.nn.sigmoid(gates)               # one EUP pass over all 4 gates
        i_g = sig[:, 0 * GL:1 * GL]
        f_g = sig[:, 1 * GL:2 * GL]
        o_g = sig[:, 2 * GL:3 * GL]
        g_g = 2.0 * sig[:, 3 * GL:4 * GL] - 1.0   # == tanh(orig preact); g cols pre-scaled by 2
        c = f_g * c + i_g * g_g                   # pad lanes: 0.5*0 + 0.5*0 = 0
        h_full = o_g * jnp.tanh(c)                # (B, GL); pad lanes stay exactly 0
        h = h_full[:, :KH]                        # K=16 contraction for next step's MXU

    # fc head.  C == 1 -> VPU multiply + lane reduce instead of an N=1 MXU matmul.
    if C == 1:
        out = jnp.sum(h_full * wfc_ref[...], axis=-1, keepdims=True)
    else:
        out = jax.lax.dot_general(h_full, wfc_ref[...],
                                  dimension_numbers=(((1,), (1,)), ((), ())),
                                  preferred_element_type=jnp.float32)
    out_ref[...] = out + bfc_ref[...]


def _pack_gate_cols(w, H):
    """(4H, K) PyTorch gate-major weights -> (K, NG), gate order [i,f,o,g],
    32 lanes per gate, units >= H zero-padded."""
    w = jnp.asarray(w, jnp.float32)
    K = w.shape[1]
    w = w.reshape(4, H, K)[jnp.asarray(_GATE_PERM)]                 # (4, H, K)
    wp = jnp.zeros((4, GL, K), jnp.float32).at[:, :H, :].set(w)     # (4, GL, K)
    return wp.transpose(2, 0, 1).reshape(K, NG)                     # (K, NG)


def pack_lstm_params(w_ih, w_hh, b_ih, b_hh, w_fc, b_fc):
    """One-time wrapper-side repacking (keep OFF the per-call path)."""
    H = w_hh.shape[1]
    C = w_fc.shape[0]
    assert H <= KH <= GL, "layout requires hidden_size <= 16 <= 32"

    # Pre-scale the g-gate columns by 2 so tanh(z) == 2*sigmoid(2z)-1 in-kernel.
    g_scale = jnp.ones((1, NG), jnp.float32).at[:, 3 * GL:].set(2.0)

    w_ih_p = _pack_gate_cols(w_ih, H) * g_scale                                  # (I, NG)
    w_hh_p = (jnp.zeros((KH, NG), jnp.float32)
              .at[:H, :].set(_pack_gate_cols(w_hh, H))) * g_scale                # (KH, NG)
    b_tot = jnp.asarray(b_ih, jnp.float32) + jnp.asarray(b_hh, jnp.float32)
    b_p = (jnp.zeros((4, GL), jnp.float32)
           .at[:, :H].set(b_tot.reshape(4, H)[jnp.asarray(_GATE_PERM)])
           .reshape(1, NG)) * g_scale                                            # (1, NG)
    w_fc_p = jnp.zeros((C, GL), jnp.float32).at[:, :H].set(
        jnp.asarray(w_fc, jnp.float32))                                          # (C, GL)
    b_fc_p = jnp.asarray(b_fc, jnp.float32).reshape(1, C)                        # (1, C)
    return w_ih_p, w_hh_p, b_p, w_fc_p, b_fc_p


@jax.jit
def lstm_forward(x, w_ih_p, w_hh_p, b_p, w_fc_p, b_fc_p):
    """x: (B, T, I) f32, batch-first like nn.LSTM(batch_first=True).
    Packed params from pack_lstm_params().  Returns (B, num_classes) f32 —
    same as the PyTorch module's forward."""
    x = jnp.asarray(x, jnp.float32)
    B = x.shape[0]
    C = w_fc_p.shape[0]
    x_tm = jnp.transpose(x, (1, 0, 2))   # (T, B, I) time-major

    vmem = pl.BlockSpec(memory_space=pltpu.MemorySpace.VMEM)
    return pl.pallas_call(
        lstm_kernel,
        out_shape=jax.ShapeDtypeStruct((B, C), jnp.float32),
        in_specs=[vmem] * 6,
        out_specs=vmem,
    )(x_tm, w_ih_p, w_hh_p, b_p, w_fc_p, b_fc_p)


def lstm_reference(x, w_ih, w_hh, b_ih, b_hh, w_fc, b_fc):
    """Pure-JAX reference with identical PyTorch LSTM semantics (unpacked weights)."""
    B, T, I = x.shape
    H = w_hh.shape[1]
    h = jnp.zeros((B, H), jnp.float32)
    c = jnp.zeros((B, H), jnp.float32)
    for t in range(T):
        g = x[:, t, :] @ w_ih.T + h @ w_hh.T + b_ih + b_hh
        i_g = jax.nn.sigmoid(g[:, 0 * H:1 * H])
        f_g = jax.nn.sigmoid(g[:, 1 * H:2 * H])
        g_g = jnp.tanh(g[:, 2 * H:3 * H])
        o_g = jax.nn.sigmoid(g[:, 3 * H:4 * H])
        c = f_g * c + i_g * g_g
        h = o_g * jnp.tanh(c)
    return h @ w_fc.T + b_fc


if __name__ == "__main__":
    B, T, I, H, C = 2, seq_length, input_size, hidden_size, num_classes

    key = jax.random.PRNGKey(0)
    kx, k1, k2, k3, k4, k5, k6 = jax.random.split(key, 7)

    # Deterministic parameter init (uniform(-1/sqrt(H), 1/sqrt(H)), like PyTorch).
    kstd = 1.0 / np.sqrt(H)
    w_ih = jax.random.uniform(k1, (4 * H, I), jnp.float32, -kstd, kstd)
    w_hh = jax.random.uniform(k2, (4 * H, H), jnp.float32, -kstd, kstd)
    b_ih = jax.random.uniform(k3, (4 * H,), jnp.float32, -kstd, kstd)
    b_hh = jax.random.uniform(k4, (4 * H,), jnp.float32, -kstd, kstd)
    w_fc = jax.random.uniform(k5, (C, H), jnp.float32, -kstd, kstd)
    b_fc = jax.random.uniform(k6, (C,), jnp.float32, -kstd, kstd)

    x = jax.random.normal(kx, (B, T, I), jnp.float32)

    # Weights are packed ONCE; the per-call path is just transpose(x) + pallas_call.
    packed = pack_lstm_params(w_ih, w_hh, b_ih, b_hh, w_fc, b_fc)
    packed = jax.block_until_ready(packed)

    out = lstm_forward(x, *packed)
    out = jax.block_until_ready(out)

    ref = lstm_reference(x, w_ih, w_hh, b_ih, b_hh, w_fc, b_fc)
    # Slightly looser than 1e-5: the g-gate uses the exact identity
    # tanh(z) = 2*sigmoid(2z) - 1, whose EUP approximation differs from jnp.tanh
    # by a few ULPs that compound over the 4-step recurrence.
    np.testing.assert_allclose(np.asarray(out), np.asarray(ref), rtol=1e-4, atol=2e-5)

    print("KERNEL_OK")
</pallas_src>

<mosaic_0001>
module attributes {stable_mosaic.version = 11 : i64} {
  func.func @lstm_kernel(%arg0: memref<4x2x1xf32, #tpu.memory_space<vmem>>, %arg1: memref<1x128xf32, #tpu.memory_space<vmem>>, %arg2: memref<16x128xf32, #tpu.memory_space<vmem>>, %arg3: memref<1x128xf32, #tpu.memory_space<vmem>>, %arg4: memref<1x32xf32, #tpu.memory_space<vmem>>, %arg5: memref<1x1xf32, #tpu.memory_space<vmem>>, %arg6: memref<2x1xf32, #tpu.memory_space<vmem>>) attributes {dimension_semantics = [], scalar_prefetch = 0 : i64, scratch_operands = 0 : i64, tpu.core_type = #tpu.core_type<tc>} {
    %c0 = arith.constant 0 : index
    %c0_0 = arith.constant 0 : index
    %c0_1 = arith.constant 0 : index
    %0 = vector.load %arg0[%c0, %c0_0, %c0_1] : memref<4x2x1xf32, #tpu.memory_space<vmem>>, vector<4x2x1xf32>
    %c0_2 = arith.constant 0 : index
    %c0_3 = arith.constant 0 : index
    %1 = vector.load %arg1[%c0_2, %c0_3] : memref<1x128xf32, #tpu.memory_space<vmem>>, vector<1x128xf32>
    %c0_4 = arith.constant 0 : index
    %c0_5 = arith.constant 0 : index
    %2 = vector.load %arg2[%c0_4, %c0_5] : memref<16x128xf32, #tpu.memory_space<vmem>>, vector<16x128xf32>
    %c0_6 = arith.constant 0 : index
    %c0_7 = arith.constant 0 : index
    %3 = vector.load %arg3[%c0_6, %c0_7] : memref<1x128xf32, #tpu.memory_space<vmem>>, vector<1x128xf32>
    %4 = vector.shape_cast %1 : vector<1x128xf32> to vector<1x1x128xf32>
    %5 = vector.broadcast %0 : vector<4x2x1xf32> to vector<4x2x128xf32>
    %6 = vector.broadcast %4 : vector<1x1x128xf32> to vector<4x2x128xf32>
    %7 = arith.mulf %5, %6 : vector<4x2x128xf32>
    %8 = vector.shape_cast %3 : vector<1x128xf32> to vector<1x1x128xf32>
    %9 = vector.broadcast %8 : vector<1x1x128xf32> to vector<4x2x128xf32>
    %10 = arith.addf %7, %9 : vector<4x2x128xf32>
    %cst = arith.constant 0.000000e+00 : f32
    %11 = vector.broadcast %cst : f32 to vector<2x16xf32>
    %cst_8 = arith.constant 0.000000e+00 : f32
    %12 = vector.broadcast %cst_8 : f32 to vector<2x32xf32>
    %13 = vector.extract_strided_slice %10 {offsets = [0, 0, 0], sizes = [1, 2, 128], strides = [1, 1, 1]} : vector<4x2x128xf32> to vector<1x2x128xf32>
    %14 = vector.shape_cast %13 : vector<1x2x128xf32> to vector<2x128xf32>
    %cst_9 = arith.constant dense<0.000000e+00> : vector<2x128xf32>
    %15 = tpu.matmul %11, %2, %cst_9 {dimension_numbers = #tpu.dot_dimension_numbers<[1], [0], [0], [1], [0, 0, 1, 1], [], []>} : vector<2x16xf32>, vector<16x128xf32>, vector<2x128xf32> -> vector<2x128xf32>
    %16 = arith.addf %14, %15 : vector<2x128xf32>
    %17 = arith.negf %16 : vector<2x128xf32>
    %18 = math.exp %17 : vector<2x128xf32>
    %cst_10 = arith.constant 1.000000e+00 : f32
    %19 = vector.broadcast %cst_10 : f32 to vector<2x128xf32>
    %20 = arith.addf %19, %18 : vector<2x128xf32>
    %21 = arith.divf %19, %20 : vector<2x128xf32>
    %22 = vector.extract_strided_slice %21 {offsets = [0, 0], sizes = [2, 32], strides = [1, 1]} : vector<2x128xf32> to vector<2x32xf32>
    %23 = vector.extract_strided_slice %21 {offsets = [0, 32], sizes = [2, 32], strides = [1, 1]} : vector<2x128xf32> to vector<2x32xf32>
    %24 = vector.extract_strided_slice %21 {offsets = [0, 64], sizes = [2, 32], strides = [1, 1]} : vector<2x128xf32> to vector<2x32xf32>
    %25 = vector.extract_strided_slice %21 {offsets = [0, 96], sizes = [2, 32], strides = [1, 1]} : vector<2x128xf32> to vector<2x32xf32>
    %cst_11 = arith.constant 2.000000e+00 : f32
    %26 = vector.broadcast %cst_11 : f32 to vector<2x32xf32>
    %27 = arith.mulf %26, %25 : vector<2x32xf32>
    %cst_12 = arith.constant 1.000000e+00 : f32
    %28 = vector.broadcast %cst_12 : f32 to vector<2x32xf32>
    %29 = arith.subf %27, %28 : vector<2x32xf32>
    %30 = arith.mulf %23, %12 : vector<2x32xf32>
    %31 = arith.mulf %22, %29 : vector<2x32xf32>
    %32 = arith.addf %30, %31 : vector<2x32xf32>
    %33 = math.tanh %32 : vector<2x32xf32>
    %34 = arith.mulf %24, %33 : vector<2x32xf32>
    %35 = vector.extract_strided_slice %34 {offsets = [0, 0], sizes = [2, 16], strides = [1, 1]} : vector<2x32xf32> to vector<2x16xf32>
    %36 = vector.extract_strided_slice %10 {offsets = [1, 0, 0], sizes = [1, 2, 128], strides = [1, 1, 1]} : vector<4x2x128xf32> to vector<1x2x128xf32>
    %37 = vector.shape_cast %36 : vector<1x2x128xf32> to vector<2x128xf32>
    %cst_13 = arith.constant dense<0.000000e+00> : vector<2x128xf32>
    %38 = tpu.matmul %35, %2, %cst_13 {dimension_numbers = #tpu.dot_dimension_numbers<[1], [0], [0], [1], [0, 0, 1, 1], [], []>} : vector<2x16xf32>, vector<16x128xf32>, vector<2x128xf32> -> vector<2x128xf32>
    %39 = arith.addf %37, %38 : vector<2x128xf32>
    %40 = arith.negf %39 : vector<2x128xf32>
    %41 = math.exp %40 : vector<2x128xf32>
    %cst_14 = arith.constant 1.000000e+00 : f32
    %42 = vector.broadcast %cst_14 : f32 to vector<2x128xf32>
    %43 = arith.addf %42, %41 : vector<2x128xf32>
    %44 = arith.divf %42, %43 : vector<2x128xf32>
    %45 = vector.extract_strided_slice %44 {offsets = [0, 0], sizes = [2, 32], strides = [1, 1]} : vector<2x128xf32> to vector<2x32xf32>
    %46 = vector.extract_strided_slice %44 {offsets = [0, 32], sizes = [2, 32], strides = [1, 1]} : vector<2x128xf32> to vector<2x32xf32>
    %47 = vector.extract_strided_slice %44 {offsets = [0, 64], sizes = [2, 32], strides = [1, 1]} : vector<2x128xf32> to vector<2x32xf32>
    %48 = vector.extract_strided_slice %44 {offsets = [0, 96], sizes = [2, 32], strides = [1, 1]} : vector<2x128xf32> to vector<2x32xf32>
    %cst_15 = arith.constant 2.000000e+00 : f32
    %49 = vector.broadcast %cst_15 : f32 to vector<2x32xf32>
    %50 = arith.mulf %49, %48 : vector<2x32xf32>
    %cst_16 = arith.constant 1.000000e+00 : f32
    %51 = vector.broadcast %cst_16 : f32 to vector<2x32xf32>
    %52 = arith.subf %50, %51 : vector<2x32xf32>
    %53 = arith.mulf %46, %32 : vector<2x32xf32>
    %54 = arith.mulf %45, %52 : vector<2x32xf32>
    %55 = arith.addf %53, %54 : vector<2x32xf32>
    %56 = math.tanh %55 : vector<2x32xf32>
    %57 = arith.mulf %47, %56 : vector<2x32xf32>
    %58 = vector.extract_strided_slice %57 {offsets = [0, 0], sizes = [2, 16], strides = [1, 1]} : vector<2x32xf32> to vector<2x16xf32>
    %59 = vector.extract_strided_slice %10 {offsets = [2, 0, 0], sizes = [1, 2, 128], strides = [1, 1, 1]} : vector<4x2x128xf32> to vector<1x2x128xf32>
    %60 = vector.shape_cast %59 : vector<1x2x128xf32> to vector<2x128xf32>
    %cst_17 = arith.constant dense<0.000000e+00> : vector<2x128xf32>
    %61 = tpu.matmul %58, %2, %cst_17 {dimension_numbers = #tpu.dot_dimension_numbers<[1], [0], [0], [1], [0, 0, 1, 1], [], []>} : vector<2x16xf32>, vector<16x128xf32>, vector<2x128xf32> -> vector<2x128xf32>
    %62 = arith.addf %60, %61 : vector<2x128xf32>
    %63 = arith.negf %62 : vector<2x128xf32>
    %64 = math.exp %63 : vector<2x128xf32>
    %cst_18 = arith.constant 1.000000e+00 : f32
    %65 = vector.broadcast %cst_18 : f32 to vector<2x128xf32>
    %66 = arith.addf %65, %64 : vector<2x128xf32>
    %67 = arith.divf %65, %66 : vector<2x128xf32>
    %68 = vector.extract_strided_slice %67 {offsets = [0, 0], sizes = [2, 32], strides = [1, 1]} : vector<2x128xf32> to vector<2x32xf32>
    %69 = vector.extract_strided_slice %67 {offsets = [0, 32], sizes = [2, 32], strides = [1, 1]} : vector<2x128xf32> to vector<2x32xf32>
    %70 = vector.extract_strided_slice %67 {offsets = [0, 64], sizes = [2, 32], strides = [1, 1]} : vector<2x128xf32> to vector<2x32xf32>
    %71 = vector.extract_strided_slice %67 {offsets = [0, 96], sizes = [2, 32], strides = [1, 1]} : vector<2x128xf32> to vector<2x32xf32>
    %cst_19 = arith.constant 2.000000e+00 : f32
    %72 = vector.broadcast %cst_19 : f32 to vector<2x32xf32>
    %73 = arith.mulf %72, %71 : vector<2x32xf32>
    %cst_20 = arith.constant 1.000000e+00 : f32
    %74 = vector.broadcast %cst_20 : f32 to vector<2x32xf32>
    %75 = arith.subf %73, %74 : vector<2x32xf32>
    %76 = arith.mulf %69, %55 : vector<2x32xf32>
    %77 = arith.mulf %68, %75 : vector<2x32xf32>
    %78 = arith.addf %76, %77 : vector<2x32xf32>
    %79 = math.tanh %78 : vector<2x32xf32>
    %80 = arith.mulf %70, %79 : vector<2x32xf32>
    %81 = vector.extract_strided_slice %80 {offsets = [0, 0], sizes = [2, 16], strides = [1, 1]} : vector<2x32xf32> to vector<2x16xf32>
    %82 = vector.extract_strided_slice %10 {offsets = [3, 0, 0], sizes = [1, 2, 128], strides = [1, 1, 1]} : vector<4x2x128xf32> to vector<1x2x128xf32>
    %83 = vector.shape_cast %82 : vector<1x2x128xf32> to vector<2x128xf32>
    %cst_21 = arith.constant dense<0.000000e+00> : vector<2x128xf32>
    %84 = tpu.matmul %81, %2, %cst_21 {dimension_numbers = #tpu.dot_dimension_numbers<[1], [0], [0], [1], [0, 0, 1, 1], [], []>} : vector<2x16xf32>, vector<16x128xf32>, vector<2x128xf32> -> vector<2x128xf32>
    %85 = arith.addf %83, %84 : vector<2x128xf32>
    %86 = arith.negf %85 : vector<2x128xf32>
    %87 = math.exp %86 : vector<2x128xf32>
    %cst_22 = arith.constant 1.000000e+00 : f32
    %88 = vector.broadcast %cst_22 : f32 to vector<2x128xf32>
    %89 = arith.addf %88, %87 : vector<2x128xf32>
    %90 = arith.divf %88, %89 : vector<2x128xf32>
    %91 = vector.extract_strided_slice %90 {offsets = [0, 0], sizes = [2, 32], strides = [1, 1]} : vector<2x128xf32> to vector<2x32xf32>
    %92 = vector.extract_strided_slice %90 {offsets = [0, 32], sizes = [2, 32], strides = [1, 1]} : vector<2x128xf32> to vector<2x32xf32>
    %93 = vector.extract_strided_slice %90 {offsets = [0, 64], sizes = [2, 32], strides = [1, 1]} : vector<2x128xf32> to vector<2x32xf32>
    %94 = vector.extract_strided_slice %90 {offsets = [0, 96], sizes = [2, 32], strides = [1, 1]} : vector<2x128xf32> to vector<2x32xf32>
    %cst_23 = arith.constant 2.000000e+00 : f32
    %95 = vector.broadcast %cst_23 : f32 to vector<2x32xf32>
    %96 = arith.mulf %95, %94 : vector<2x32xf32>
    %cst_24 = arith.constant 1.000000e+00 : f32
    %97 = vector.broadcast %cst_24 : f32 to vector<2x32xf32>
    %98 = arith.subf %96, %97 : vector<2x32xf32>
    %99 = arith.mulf %92, %78 : vector<2x32xf32>
    %100 = arith.mulf %91, %98 : vector<2x32xf32>
    %101 = arith.addf %99, %100 : vector<2x32xf32>
    %102 = math.tanh %101 : vector<2x32xf32>
    %103 = arith.mulf %93, %102 : vector<2x32xf32>
    %c0_25 = arith.constant 0 : index
    %c0_26 = arith.constant 0 : index
    %104 = vector.load %arg4[%c0_25, %c0_26] : memref<1x32xf32, #tpu.memory_space<vmem>>, vector<1x32xf32>
    %105 = vector.broadcast %104 : vector<1x32xf32> to vector<2x32xf32>
    %106 = arith.mulf %103, %105 : vector<2x32xf32>
    %cst_27 = arith.constant dense<0.000000e+00> : vector<2xf32>
    %107 = vector.multi_reduction <add>, %106, %cst_27 [1] : vector<2x32xf32> to vector<2xf32>
    %108 = vector.shape_cast %107 : vector<2xf32> to vector<2x1xf32>
    %c0_28 = arith.constant 0 : index
    %c0_29 = arith.constant 0 : index
    %109 = vector.load %arg5[%c0_28, %c0_29] : memref<1x1xf32, #tpu.memory_space<vmem>>, vector<1x1xf32>
    %110 = vector.broadcast %109 : vector<1x1xf32> to vector<2x1xf32>
    %111 = arith.addf %108, %110 : vector<2x1xf32>
    %c0_30 = arith.constant 0 : index
    %c0_31 = arith.constant 0 : index
    %112 = vector.load %arg6[%c0_30, %c0_31] : memref<2x1xf32, #tpu.memory_space<vmem>>, vector<2x1xf32>
    tpu.vector_store %arg6[%c0_30, %c0_31], %111 {strides = array<i32>} : memref<2x1xf32, #tpu.memory_space<vmem>>, vector<2x1xf32>,
    return
  }
}

</mosaic_0001>

<llo_original>
// kernel: lstm_forward.1
$region0: #{lstm_forward.1}
  #allocation0 [shape = 'u32[]', space=smem, size = 0x4, offset = 0x4, fixed_abs, tag = 'smem constant byte address 0x4 - core index']
  #allocation1 [shape = 'u32[72,128]{1,0:T(1,128)}', space=vmem, size = 0x9000, scoped, tag = 'internal scratch']
  #allocation2 [shape = 'f32[1,1]{1,0:T(1,128)S(1)}', space=vmem, size = 0x200, scoped, tag = 'scoped memory for lstm_forward.1']
  %s0 = inlined_call_operand.vmem [shape: f32[4,2,1], index: 0, kind: input, shape index: {}]
  %s1 = inlined_call_operand.vmem [shape: f32[1,128], index: 1, kind: input, shape index: {}]
  %s2 = inlined_call_operand.hbm [shape: f32[16,128], index: 2, kind: input, shape index: {}]
  %s3 = inlined_call_operand.vmem [shape: f32[1,128], index: 3, kind: input, shape index: {}]
  %s4 = inlined_call_operand.vmem [shape: f32[1,32], index: 4, kind: input, shape index: {}]
  %s5 = inlined_call_operand.<no memory space> [shape: f32[1,1], index: 5, kind: input, shape index: {}]
  %s6 = inlined_call_operand.vmem [shape: f32[2,1], index: 6, kind: output, shape index: {}]
  %s7 = sld [smem:[#allocation0]]
  $region38: #{lstm_forward.1} parent=0
    _
  %s9 = ssub.s32 1, %s7
  %s10 = scalar_select 0, %s9, %s7
  %v11 = vstv %s5
  %12 = vst [vmem:[#allocation2] sm:$0x1] %v11
  $region1: #{lstm_forward.1} parent=0
    #allocation3 [shape = 'u8[8192]{0}', space=vmem, size = 0x2000, scoped, tag = 'input window, operand 2, single buffered']
    #allocation4 [shape = 's32[1]{0}', space=sflag, size = 0x4, scoped, tag = 'scoped memory for lstm_forward.1']
    %13 = vsyncpa [#allocation4], 0
    // Predicated region
    $region2: #{lstm_forward.1} parent=1 // pred_check
      _
    $region3: #{lstm_forward.1} parent=1 // pred_check_branch
      %15 = sbr.rel (0) target = $region5
    $region4: #{lstm_forward.1} parent=1 // pred_region
      _
    $region5: #{lstm_forward.1} parent=1 // pred_fallthru
      _
    // Predicated region
    $region6: #{lstm_forward.1} parent=1 // pred_check
      _
    $region7: #{lstm_forward.1} parent=1 // pred_check_branch
      %17 = sbr.rel (0) target = $region9
    $region8: #{lstm_forward.1} parent=1 // pred_region
      _
    $region9: #{lstm_forward.1} parent=1 // pred_fallthru
      _
    // Predicated region
    $region10: #{lstm_forward.1} parent=1 // pred_check
      _
    $region11: #{lstm_forward.1} parent=1 // pred_check_branch
      %19 = sbr.rel (0) target = $region13
    $region12: #{lstm_forward.1} parent=1 // pred_region
      %21 = vsyncadd [#allocation4], 0
      %s22 = sshll.u32 %s2, 4
      %s23 = int_to_ptr.hbm [resolvable:$true] %s22
      %s24 = sshll.u32 [#allocation3], 4
      %s25 = int_to_ptr.vmem [resolvable:$true] %s24
      %30 = dma.hbm_to_vmem [thread:$0]  %s23, 256, %s25, [#allocation4], 128, 128, 8
    $region13: #{lstm_forward.1} parent=1 // pred_fallthru
      _
    // Predicated region
    $region14: #{lstm_forward.1} parent=1 // pred_check
      _
    $region15: #{lstm_forward.1} parent=1 // pred_check_branch
      %32 = sbr.rel (0) target = $region17
    $region16: #{lstm_forward.1} parent=1 // pred_region
      _
    $region17: #{lstm_forward.1} parent=1 // pred_fallthru
      _
    // Predicated region
    $region18: #{lstm_forward.1} parent=1 // pred_check
      _
    $region19: #{lstm_forward.1} parent=1 // pred_check_branch
      %34 = sbr.rel (0) target = $region21
    $region20: #{lstm_forward.1} parent=1 // pred_region
      _
    $region21: #{lstm_forward.1} parent=1 // pred_fallthru
      _
    // Predicated region
    $region22: #{lstm_forward.1} parent=1 // pred_check
      _
    $region23: #{lstm_forward.1} parent=1 // pred_check_branch
      %36 = sbr.rel (0) target = $region25
    $region24: #{lstm_forward.1} parent=1 // pred_region
      _
    $region25: #{lstm_forward.1} parent=1 // pred_fallthru
      _
    // Predicated region
    $region26: #{lstm_forward.1} parent=1 // pred_check
      _
    $region27: #{lstm_forward.1} parent=1 // pred_check_branch
      %38 = sbr.rel (0) target = $region29
    $region28: #{lstm_forward.1} parent=1 // pred_region
      %40 = dma.done [#allocation4], 256
    $region29: #{lstm_forward.1} parent=1 // pred_fallthru
      _
    %v41 = vld [vmem:[%s0] sm:$0x3]
    %v42 = vld [vmem:[%s0 + $0x2] sm:$0x3]
    %v43 = vld [vmem:[%s0 + $0x4] sm:$0x3]
    %v44 = vld [vmem:[%s0 + $0x6] sm:$0x3]
    %v45 = vld [vmem:[%s1] sm:$0x1]
    %v46 = vld [vmem:[#allocation3] sm:$0xff]
    %v47 = vld [vmem:[#allocation3 + $0x8] sm:$0xff]
    %v48 = vld [vmem:[%s3] sm:$0x1]
    %50 = vset.pattern.permute.xlu0 0
    %51 = vperm.xlu0 %50, %v41
    %v52 = vpop.permute.xlu0 %51
    %55 = vset.pattern.permute.xlu0 0
    %56 = vperm.xlu0 %55, %v42
    %v57 = vpop.permute.xlu0 %56
    %60 = vset.pattern.permute.xlu0 0
    %61 = vperm.xlu0 %60, %v43
    %v62 = vpop.permute.xlu0 %61
    %65 = vset.pattern.permute.xlu0 0
    %66 = vperm.xlu0 %65, %v44
    %v67 = vpop.permute.xlu0 %66
    %v70 = vperm.slane %v45, 0
    %v72 = vmul.f32 %v52, %v70
    %v73 = vmul.f32 %v57, %v70
    %v74 = vmul.f32 %v62, %v70
    %v75 = vmul.f32 %v67, %v70
    %v77 = vperm.slane %v48, 0
    %v79 = vadd.f32 %v72, %v77
    %v80 = vadd.f32 %v73, %v77
    %v81 = vadd.f32 %v74, %v77
    %v82 = vadd.f32 %v75, %v77
    %vm83 = vcmask 130048
    %v85 = vsel %vm83, 0.0, 0
    %87 = vmatpush.msra.mxu0 0.0
    %88 = vmatpush.msra.mxu0 0.0
    %89 = vmatpush.msra.mxu0 0.0
    %90 = vmatpush.msra.mxu0 0.0
    %91 = vmatpush.msra.mxu0 0.0
    %92 = vmatpush.msra.mxu0 0.0
    %93 = vmatpush.msra.mxu0 0.0
    %94 = vmatpush.msra.mxu0 0.0
    %95 = vmatpush.msra.mxu0 0.0
    %96 = vmatpush.msra.mxu0 0.0
    %97 = vmatpush.msra.mxu0 0.0
    %98 = vmatpush.msra.mxu0 0.0
    %99 = vmatpush.msra.mxu0 0.0
    %100 = vmatpush.msra.mxu0 0.0
    %101 = vmatpush.msra.mxu0 %v47
    %102 = vmatpush.msra.mxu0 %v46
    %103 = vmatmul.f32.gmra.mxu0 %v85
    %v104 = vpop.f32.mrf.mxu0
    %v105 = vadd.f32 0.0, %v104
    %106 = vdwg.mxu0
    %v107 = vadd.f32 %v79, %v105
    %v108 = vxor.u32 %v107, 2147483648
    %v109 = vmul.f32 %v108, 1.442695
    %v110 = vpow.pop %v109
    %v111 = vadd.f32 %v110, 1.0
    %v112 = vrcp.pop %v111
    %v113 = vmul.f32 %v111, %v112
    %v114 = vsub.f32 1.0, %v113
    %v115 = vmul.f32 %v112, %v114
    %v116 = vadd.f32 %v112, %v115
    %vm117 = vweird.f32 %v111
    %vm118 = vweird.f32 %v112
    %vm119 = vmor %vm117, %vm118
    %v120 = vsel %vm119, %v112, %v116
    %v121 = vand.u32 2147483647, %v111
    %vm122 = vcmp.eq.f32.partialorder %v121, 8.507059e+37
    %v123 = vand.u32 %v111, 2147483648
    %v124 = vor.u32 1.1754944e-38, %v123
    %v125 = vsel %vm122, %v124, %v120
    %v126 = vmul.f32 1.0, %v125
    %v127 = vmul.f32 %v126, 2.0
    %v128 = vsub.f32 %v127, 1.0
    %v129 = vmul.f32 %v126, 0.0
    %131 = vrot.lane.b32.xlu0 %v128, 32
    %v132 = vpop.permute.xlu0 %131
    %v134 = vmul.f32 %v126, %v132
    %136 = vrot.lane.b32.xlu0 %v134, 32
    %v137 = vpop.permute.xlu0 %136
    %v139 = vadd.f32 %v129, %v137
    %v140 = vtanh.pop %v139
    %142 = vrot.lane.b32.xlu0 %v140, 32
    %v143 = vpop.permute.xlu0 %142
    %v145 = vmul.f32 %v126, %v143
    %147 = vrot.lane.b32.xlu0 %v145, 64
    %v148 = vpop.permute.xlu0 %147
    %v149 = vsel %vm83, %v148, 0
    %151 = vmatpush.msra.mxu0 0.0
    %152 = vmatpush.msra.mxu0 0.0
    %153 = vmatpush.msra.mxu0 0.0
    %154 = vmatpush.msra.mxu0 0.0
    %155 = vmatpush.msra.mxu0 0.0
    %156 = vmatpush.msra.mxu0 0.0
    %157 = vmatpush.msra.mxu0 0.0
    %158 = vmatpush.msra.mxu0 0.0
    %159 = vmatpush.msra.mxu0 0.0
    %160 = vmatpush.msra.mxu0 0.0
    %161 = vmatpush.msra.mxu0 0.0
    %162 = vmatpush.msra.mxu0 0.0
    %163 = vmatpush.msra.mxu0 0.0
    %164 = vmatpush.msra.mxu0 0.0
    %165 = vmatpush.msra.mxu0 %v47
    %166 = vmatpush.msra.mxu0 %v46
    %167 = vmatmul.f32.gmra.mxu0 %v149
    %v168 = vpop.f32.mrf.mxu0
    %v169 = vadd.f32 0.0, %v168
    %170 = vdwg.mxu0
    %v171 = vadd.f32 %v80, %v169
    %v172 = vxor.u32 %v171, 2147483648
    %v173 = vmul.f32 %v172, 1.442695
    %v174 = vpow.pop %v173
    %v175 = vadd.f32 %v174, 1.0
    %v176 = vrcp.pop %v175
    %v177 = vmul.f32 %v175, %v176
    %v178 = vsub.f32 1.0, %v177
    %v179 = vmul.f32 %v176, %v178
    %v180 = vadd.f32 %v176, %v179
    %vm181 = vweird.f32 %v175
    %vm182 = vweird.f32 %v176
    %vm183 = vmor %vm181, %vm182
    %v184 = vsel %vm183, %v176, %v180
    %v185 = vand.u32 2147483647, %v175
    %vm186 = vcmp.eq.f32.partialorder %v185, 8.507059e+37
    %v187 = vand.u32 %v175, 2147483648
    %v188 = vor.u32 1.1754944e-38, %v187
    %v189 = vsel %vm186, %v188, %v184
    %v190 = vmul.f32 1.0, %v189
    %v191 = vmul.f32 %v190, 2.0
    %v192 = vsub.f32 %v191, 1.0
    %v193 = vmul.f32 %v190, %v139
    %195 = vrot.lane.b32.xlu0 %v192, 32
    %v196 = vpop.permute.xlu0 %195
    %v198 = vmul.f32 %v190, %v196
    %200 = vrot.lane.b32.xlu0 %v198, 32
    %v201 = vpop.permute.xlu0 %200
    %v203 = vadd.f32 %v193, %v201
    %v204 = vtanh.pop %v203
    %206 = vrot.lane.b32.xlu0 %v204, 32
    %v207 = vpop.permute.xlu0 %206
    %v209 = vmul.f32 %v190, %v207
    %211 = vrot.lane.b32.xlu0 %v209, 64
    %v212 = vpop.permute.xlu0 %211
    %v213 = vsel %vm83, %v212, 0
    %215 = vmatpush.msra.mxu0 0.0
    %216 = vmatpush.msra.mxu0 0.0
    %217 = vmatpush.msra.mxu0 0.0
    %218 = vmatpush.msra.mxu0 0.0
    %219 = vmatpush.msra.mxu0 0.0
    %220 = vmatpush.msra.mxu0 0.0
    %221 = vmatpush.msra.mxu0 0.0
    %222 = vmatpush.msra.mxu0 0.0
    %223 = vmatpush.msra.mxu0 0.0
    %224 = vmatpush.msra.mxu0 0.0
    %225 = vmatpush.msra.mxu0 0.0
    %226 = vmatpush.msra.mxu0 0.0
    %227 = vmatpush.msra.mxu0 0.0
    %228 = vmatpush.msra.mxu0 0.0
    %229 = vmatpush.msra.mxu0 %v47
    %230 = vmatpush.msra.mxu0 %v46
    %231 = vmatmul.f32.gmra.mxu0 %v213
    %v232 = vpop.f32.mrf.mxu0
    %v233 = vadd.f32 0.0, %v232
    %234 = vdwg.mxu0
    %v235 = vadd.f32 %v81, %v233
    %v236 = vxor.u32 %v235, 2147483648
    %v237 = vmul.f32 %v236, 1.442695
    %v238 = vpow.pop %v237
    %v239 = vadd.f32 %v238, 1.0
    %v240 = vrcp.pop %v239
    %v241 = vmul.f32 %v239, %v240
    %v242 = vsub.f32 1.0, %v241
    %v243 = vmul.f32 %v240, %v242
    %v244 = vadd.f32 %v240, %v243
    %vm245 = vweird.f32 %v239
    %vm246 = vweird.f32 %v240
    %vm247 = vmor %vm245, %vm246
    %v248 = vsel %vm247, %v240, %v244
    %v249 = vand.u32 2147483647, %v239
    %vm250 = vcmp.eq.f32.partialorder %v249, 8.507059e+37
    %v251 = vand.u32 %v239, 2147483648
    %v252 = vor.u32 1.1754944e-38, %v251
    %v253 = vsel %vm250, %v252, %v248
    %v254 = vmul.f32 1.0, %v253
    %v255 = vmul.f32 %v254, 2.0
    %v256 = vsub.f32 %v255, 1.0
    %v257 = vmul.f32 %v254, %v203
    %259 = vrot.lane.b32.xlu0 %v256, 32
    %v260 = vpop.permute.xlu0 %259
    %v262 = vmul.f32 %v254, %v260
    %264 = vrot.lane.b32.xlu0 %v262, 32
    %v265 = vpop.permute.xlu0 %264
    %v267 = vadd.f32 %v257, %v265
    %v268 = vtanh.pop %v267
    %270 = vrot.lane.b32.xlu0 %v268, 32
    %v271 = vpop.permute.xlu0 %270
    %v273 = vmul.f32 %v254, %v271
    %275 = vrot.lane.b32.xlu0 %v273, 64
    %v276 = vpop.permute.xlu0 %275
    %v277 = vsel %vm83, %v276, 0
    %279 = vmatpush.msra.mxu0 0.0
    %280 = vmatpush.msra.mxu0 0.0
    %281 = vmatpush.msra.mxu0 0.0
    %282 = vmatpush.msra.mxu0 0.0
    %283 = vmatpush.msra.mxu0 0.0
    %284 = vmatpush.msra.mxu0 0.0
    %285 = vmatpush.msra.mxu0 0.0
    %286 = vmatpush.msra.mxu0 0.0
    %287 = vmatpush.msra.mxu0 0.0
    %288 = vmatpush.msra.mxu0 0.0
    %289 = vmatpush.msra.mxu0 0.0
    %290 = vmatpush.msra.mxu0 0.0
    %291 = vmatpush.msra.mxu0 0.0
    %292 = vmatpush.msra.mxu0 0.0
    %293 = vmatpush.msra.mxu0 %v47
    %294 = vmatpush.msra.mxu0 %v46
    %295 = vmatmul.f32.gmra.mxu0 %v277
    %v296 = vpop.f32.mrf.mxu0
    %v297 = vadd.f32 0.0, %v296
    %298 = vdwg.mxu0
    %v299 = vadd.f32 %v82, %v297
    %v300 = vxor.u32 %v299, 2147483648
    %v301 = vmul.f32 %v300, 1.442695
    %v302 = vpow.pop %v301
    %v303 = vadd.f32 %v302, 1.0
    %v304 = vrcp.pop %v303
    %v305 = vmul.f32 %v303, %v304
    %v306 = vsub.f32 1.0, %v305
    %v307 = vmul.f32 %v304, %v306
    %v308 = vadd.f32 %v304, %v307
    %vm309 = vweird.f32 %v303
    %vm310 = vweird.f32 %v304
    %vm311 = vmor %vm309, %vm310
    %v312 = vsel %vm311, %v304, %v308
    %v313 = vand.u32 2147483647, %v303
    %vm314 = vcmp.eq.f32.partialorder %v313, 8.507059e+37
    %v315 = vand.u32 %v303, 2147483648
    %v316 = vor.u32 1.1754944e-38, %v315
    %v317 = vsel %vm314, %v316, %v312
    %v318 = vmul.f32 1.0, %v317
    %v319 = vmul.f32 %v318, 2.0
    %v320 = vsub.f32 %v319, 1.0
    %v321 = vmul.f32 %v318, %v267
    %323 = vrot.lane.b32.xlu0 %v320, 32
    %v324 = vpop.permute.xlu0 %323
    %v326 = vmul.f32 %v318, %v324
    %328 = vrot.lane.b32.xlu0 %v326, 32
    %v329 = vpop.permute.xlu0 %328
    %v331 = vadd.f32 %v321, %v329
    %v332 = vtanh.pop %v331
    %334 = vrot.lane.b32.xlu0 %v332, 32
    %v335 = vpop.permute.xlu0 %334
    %v337 = vmul.f32 %v318, %v335
    %v338 = vld [vmem:[%s4] sm:$0x1]
    %v340 = vperm.slane %v338, 0
    %341 = vrot.lane.b32.xlu0 %v340, 64
    %v342 = vpop.permute.xlu0 %341
    %v344 = vmul.f32 %v337, %v342
    %346 = vrot.lane.b32.xlu0 %v344, 64
    %v347 = vpop.permute.xlu0 %346
    %vm349 = vcmask 254976
    %v350 = vsel %vm349, %v347, 0.0
    %351 = vadd.xlane.f32.xlu0 %v350
    %v352 = vpop.xlane.xlu0 %351
    %v353 = vld [vmem:[#allocation2] sm:$0x1]
    %v355 = vperm.slane %v353, 0
    %v357 = vadd.f32 %v352, %v355
    %vm358 = vcmask 1024
    %359 = vst.msk [vmem:[%s6] sm:$0x3] %vm358, %v357
    // Predicated region
    $region30: #{lstm_forward.1} parent=1 // pred_check
      _
    $region31: #{lstm_forward.1} parent=1 // pred_check_branch
      %361 = sbr.rel (0) target = $region33
    $region32: #{lstm_forward.1} parent=1 // pred_region
      _
    $region33: #{lstm_forward.1} parent=1 // pred_fallthru
      _
    // Predicated region
    $region34: #{lstm_forward.1} parent=1 // pred_check
      _
    $region35: #{lstm_forward.1} parent=1 // pred_check_branch
      %363 = sbr.rel (0) target = $region37
    $region36: #{lstm_forward.1} parent=1 // pred_region
      _
    $region37: #{lstm_forward.1} parent=1 // pred_fallthru
      _
    %364 = vsyncpa [#allocation4], 1

</llo_original>
